<compile_context>
chip_gen: v7x
topology: tpu7x:2x2x1
jax: 0.10.0
libtpu: 0.0.40
codegen_flags: <defaults>
</compile_context>

<pallas_src>
import functools

import jax
import jax.numpy as jnp
from jax import lax
from jax.experimental import pallas as pl
from jax.experimental.pallas import tpu as pltpu


def _fused_single_k_kernel(x_ref, w_ref, b_ref, o_ref, *, negative_slope):
    # x_ref: (tm, K)  w_ref: (tn, K)  <- PyTorch (out, in) layout, contract along K
    # b_ref: (1, tn)  o_ref: (tm, tn)
    acc = lax.dot_general(
        x_ref[...],
        w_ref[...],
        dimension_numbers=(((1,), (1,)), ((), ())),
        preferred_element_type=jnp.float32,
    )
    w1 = acc + b_ref[...]  # bias (1, tn) broadcasts over rows
    if negative_slope != 1.0:
        w1 = jnp.where(w1 > 0, w1, w1 * negative_slope)
    # slope == 1.0 -> LeakyReLU is the identity; epilogue skipped entirely.
    o_ref[...] = w1.astype(o_ref.dtype)


def _fused_multi_k_kernel(x_ref, w_ref, b_ref, o_ref, acc_ref, *, negative_slope):
    # General path for K // tk > 1: f32 VMEM accumulator, K is the innermost axis.
    k = pl.program_id(2)

    @pl.when(k == 0)
    def _():
        acc_ref[...] = jnp.zeros_like(acc_ref)

    acc_ref[...] += lax.dot_general(
        x_ref[...],
        w_ref[...],
        dimension_numbers=(((1,), (1,)), ((), ())),
        preferred_element_type=jnp.float32,
    )

    @pl.when(k == pl.num_programs(2) - 1)
    def _():
        w1 = acc_ref[...] + b_ref[...]
        if negative_slope != 1.0:
            w1 = jnp.where(w1 > 0, w1, w1 * negative_slope)
        o_ref[...] = w1.astype(o_ref.dtype)


def linear_leaky(x, weight, bias, negative_slope, *, tm=256, tn=256, tk=512):
    """Fused y = leaky_relu(x @ weight.T + bias, negative_slope).

    x: (M, K) f32; weight: (N, K) f32 (PyTorch nn.Linear layout); bias: (N,) f32.
    """
    M, K = x.shape
    N, Kw = weight.shape
    assert K == Kw, "weight must be (out_features, in_features)"

    # Clamp tiles to the problem size; tiny shapes collapse to a degenerate grid.
    tm = min(tm, M)
    tn = min(tn, N)
    tk = min(tk, K)
    assert M % tm == 0 and N % tn == 0 and K % tk == 0, "dims must divide tiles"
    nk = K // tk

    b2d = bias.reshape(1, N)  # 2D for TPU layout (cheap reshape, no transpose)
    ns = float(negative_slope)

    if nk == 1:
        # Fast path: whole K in one step -> no scratch, no pl.when gating.
        kernel = functools.partial(_fused_single_k_kernel, negative_slope=ns)
        return pl.pallas_call(
            kernel,
            out_shape=jax.ShapeDtypeStruct((M, N), x.dtype),
            grid=(M // tm, N // tn),
            in_specs=[
                pl.BlockSpec((tm, K), lambda i, j: (i, 0)),   # x
                pl.BlockSpec((tn, K), lambda i, j: (j, 0)),   # weight (N, K) layout
                pl.BlockSpec((1, tn), lambda i, j: (0, j)),   # bias
            ],
            out_specs=pl.BlockSpec((tm, tn), lambda i, j: (i, j)),
            compiler_params=pltpu.CompilerParams(
                dimension_semantics=("parallel", "parallel"),
            ),
        )(x, weight, b2d)

    # General path: tiled (M, N, K) grid with f32 accumulator, K innermost.
    kernel = functools.partial(_fused_multi_k_kernel, negative_slope=ns)
    return pl.pallas_call(
        kernel,
        out_shape=jax.ShapeDtypeStruct((M, N), x.dtype),
        grid=(M // tm, N // tn, nk),
        in_specs=[
            pl.BlockSpec((tm, tk), lambda i, j, k: (i, k)),   # x
            pl.BlockSpec((tn, tk), lambda i, j, k: (j, k)),   # weight (N, K) layout
            pl.BlockSpec((1, tn), lambda i, j, k: (0, j)),    # bias
        ],
        out_specs=pl.BlockSpec((tm, tn), lambda i, j, k: (i, j)),
        scratch_shapes=[pltpu.VMEM((tm, tn), jnp.float32)],
        compiler_params=pltpu.CompilerParams(
            dimension_semantics=("parallel", "parallel", "arbitrary"),
        ),
    )(x, weight, b2d)


if __name__ == "__main__":
    # Module: Linear(16, 32) applied to x1 of shape (32, 16), negative_slope = 1
    negative_slope = 1.0

    key = jax.random.PRNGKey(0)
    kx, kw, kb = jax.random.split(key, 3)

    M, K, N = 32, 16, 32
    x1 = jax.random.normal(kx, (M, K), dtype=jnp.float32)
    # Deterministic parameters (mimic nn.Linear init range ~U(-1/sqrt(K), 1/sqrt(K)))
    bound = 1.0 / (K ** 0.5)
    weight = jax.random.uniform(kw, (N, K), minval=-bound, maxval=bound,
                                dtype=jnp.float32)
    bias = jax.random.uniform(kb, (N,), minval=-bound, maxval=bound,
                              dtype=jnp.float32)

    def ref_fn(x, w, b, ns):
        w1 = x @ w.T + b
        return jnp.where(w1 > 0, w1, w1 * ns)

    # 1) Module configuration (slope = 1 -> identity epilogue, single-K fast path).
    out = jax.block_until_ready(linear_leaky(x1, weight, bias, negative_slope))
    assert jnp.allclose(out, ref_fn(x1, weight, bias, negative_slope),
                        atol=1e-5, rtol=1e-5), "mismatch vs reference (slope=1)"

    # 2) Exercise the real select path with a non-trivial slope (still single-K).
    out2 = jax.block_until_ready(linear_leaky(x1, weight, bias, 0.01))
    assert jnp.allclose(out2, ref_fn(x1, weight, bias, 0.01),
                        atol=1e-5, rtol=1e-5), "mismatch vs reference (slope=0.01)"

    # 3) Exercise the general multi-K accumulator path at a modest, lane-dense shape.
    kx2, kw2, kb2 = jax.random.split(jax.random.PRNGKey(1), 3)
    Mb, Kb, Nb = 128, 512, 128
    xb = jax.random.normal(kx2, (Mb, Kb), dtype=jnp.float32)
    wb = jax.random.normal(kw2, (Nb, Kb), dtype=jnp.float32) * 0.05
    bb = jax.random.normal(kb2, (Nb,), dtype=jnp.float32)
    out3 = jax.block_until_ready(linear_leaky(xb, wb, bb, 0.01, tk=256))
    assert jnp.allclose(out3, ref_fn(xb, wb, bb, 0.01),
                        atol=1e-4, rtol=1e-4), "mismatch vs reference (multi-K)"

    print("KERNEL_OK")
</pallas_src>

<mosaic_0001>
module attributes {stable_mosaic.version = 11 : i64} {
  func.func @_fused_single_k_kernel(%arg0: i32, %arg1: i32, %arg2: memref<32x16xf32, #tpu.memory_space<vmem>>, %arg3: memref<32x16xf32, #tpu.memory_space<vmem>>, %arg4: memref<1x32xf32, #tpu.memory_space<vmem>>, %arg5: memref<32x32xf32, #tpu.memory_space<vmem>>) attributes {dimension_semantics = [#tpu.dimension_semantics<parallel>, #tpu.dimension_semantics<parallel>], iteration_bounds = array<i64: 1, 1>, scalar_prefetch = 0 : i64, scratch_operands = 0 : i64, tpu.core_type = #tpu.core_type<tc>, window_params = [{transform_indices = @transform_0, window_bounds = array<i64: 32, 16>}, {transform_indices = @transform_1, window_bounds = array<i64: 32, 16>}, {transform_indices = @transform_2, window_bounds = array<i64: 1, 32>}, {transform_indices = @transform_3, window_bounds = array<i64: 32, 32>}]} {
    %c0 = arith.constant 0 : index
    %c0_0 = arith.constant 0 : index
    %0 = vector.load %arg2[%c0, %c0_0] : memref<32x16xf32, #tpu.memory_space<vmem>>, vector<32x16xf32>
    %c0_1 = arith.constant 0 : index
    %c0_2 = arith.constant 0 : index
    %1 = vector.load %arg3[%c0_1, %c0_2] : memref<32x16xf32, #tpu.memory_space<vmem>>, vector<32x16xf32>
    %cst = arith.constant dense<0.000000e+00> : vector<32x32xf32>
    %2 = tpu.matmul %0, %1, %cst {dimension_numbers = #tpu.dot_dimension_numbers<[1], [1], [0], [0], [0, 0, 1, 0], [], []>} : vector<32x16xf32>, vector<32x16xf32>, vector<32x32xf32> -> vector<32x32xf32>
    %c0_3 = arith.constant 0 : index
    %c0_4 = arith.constant 0 : index
    %3 = vector.load %arg4[%c0_3, %c0_4] : memref<1x32xf32, #tpu.memory_space<vmem>>, vector<1x32xf32>
    %4 = vector.broadcast %3 : vector<1x32xf32> to vector<32x32xf32>
    %5 = arith.addf %2, %4 : vector<32x32xf32>
    %c0_5 = arith.constant 0 : index
    %c0_6 = arith.constant 0 : index
    %6 = vector.load %arg5[%c0_5, %c0_6] : memref<32x32xf32, #tpu.memory_space<vmem>>, vector<32x32xf32>
    tpu.vector_store %arg5[%c0_5, %c0_6], %5 {strides = array<i32>} : memref<32x32xf32, #tpu.memory_space<vmem>>, vector<32x32xf32>,
    return
  }
  func.func @transform_0(%arg0: i32, %arg1: i32) -> (i32, i32) {
    %c0_i32 = arith.constant 0 : i32
    %c0_i32_0 = arith.constant 0 : i32
    return %arg0, %c0_i32 : i32, i32
  }
  func.func @transform_1(%arg0: i32, %arg1: i32) -> (i32, i32) {
    %c0_i32 = arith.constant 0 : i32
    %c0_i32_0 = arith.constant 0 : i32
    return %arg1, %c0_i32 : i32, i32
  }
  func.func @transform_2(%arg0: i32, %arg1: i32) -> (i32, i32) {
    %c0_i32 = arith.constant 0 : i32
    %c0_i32_0 = arith.constant 0 : i32
    return %c0_i32, %arg1 : i32, i32
  }
  func.func @transform_3(%arg0: i32, %arg1: i32) -> (i32, i32) {
    %c0_i32 = arith.constant 0 : i32
    return %arg0, %arg1 : i32, i32
  }
}

</mosaic_0001>

<llo_original>
// kernel: tpu_custom_call.1
$region0: #{tpu_custom_call.1}
  #allocation0 [shape = 'u32[]', space=smem, size = 0x4, offset = 0x4, fixed_abs, tag = 'smem constant byte address 0x4 - core index']
  #allocation1 [shape = 'u32[144,128]{1,0:T(1,128)}', space=vmem, size = 0x12000, scoped, tag = 'internal scratch']
  %s0 = inlined_call_operand.vmem [shape: f32[32,16], index: 0, kind: input, shape index: {}]
  %s1 = inlined_call_operand.vmem [shape: f32[32,16], index: 1, kind: input, shape index: {}]
  %s2 = inlined_call_operand.vmem [shape: f32[1,32], index: 2, kind: input, shape index: {}]
  %s3 = inlined_call_operand.hbm [shape: f32[32,32], index: 3, kind: output, shape index: {}]
  %s4 = sld [smem:[#allocation0]]
  $region22: #{tpu_custom_call.1} parent=0
    _
  %s6 = ssub.s32 1, %s4
  %s7 = scalar_select 0, %s6, %s4
  $region1: #{tpu_custom_call.1} parent=0
    #allocation2 [shape = 'u8[16384]{0}', space=vmem, size = 0x4000, scoped, tag = 'output window, operand 0, single buffered']
    #allocation3 [shape = 's32[1]{0}', space=sflag, size = 0x4, scoped, tag = 'scoped memory for tpu_custom_call.1']
    %8 = vsyncpa [#allocation3], 0
    // Predicated region
    $region2: #{tpu_custom_call.1} parent=1 // pred_check
      _
    $region3: #{tpu_custom_call.1} parent=1 // pred_check_branch
      %10 = sbr.rel (0) target = $region5
    $region4: #{tpu_custom_call.1} parent=1 // pred_region
      _
    $region5: #{tpu_custom_call.1} parent=1 // pred_fallthru
      _
    // Predicated region
    $region6: #{tpu_custom_call.1} parent=1 // pred_check
      _
    $region7: #{tpu_custom_call.1} parent=1 // pred_check_branch
      %12 = sbr.rel (0) target = $region9
    $region8: #{tpu_custom_call.1} parent=1 // pred_region
      _
    $region9: #{tpu_custom_call.1} parent=1 // pred_fallthru
      _
    // Predicated region
    $region10: #{tpu_custom_call.1} parent=1 // pred_check
      _
    $region11: #{tpu_custom_call.1} parent=1 // pred_check_branch
      %14 = sbr.rel (0) target = $region13
    $region12: #{tpu_custom_call.1} parent=1 // pred_region
      _
    $region13: #{tpu_custom_call.1} parent=1 // pred_fallthru
      _
    %v15 = vld [vmem:[%s0] sm:$0xff]
    %v16 = vld [vmem:[%s0 + $0x8] sm:$0xff]
    %v17 = vld [vmem:[%s0 + $0x10] sm:$0xff]
    %v18 = vld [vmem:[%s0 + $0x18] sm:$0xff]
    %v19 = vld [vmem:[%s1] sm:$0xff]
    %v20 = vld [vmem:[%s1 + $0x8] sm:$0xff]
    %v21 = vld [vmem:[%s1 + $0x10] sm:$0xff]
    %v22 = vld [vmem:[%s1 + $0x18] sm:$0xff]
    %v23 = vld [vmem:[%s2] sm:$0x1]
    %v25 = vlaneseq
    %v26 = vshrl.u32 %v25, 7
    %v27 = vsub.s32 0, %v26
    %v28 = vrot.slane %v23, %v27
    %vm30 = vcmask 130048
    %v32 = vsel %vm30, %v15, 0
    %v35 = vsel %vm30, %v16, 0
    %v38 = vsel %vm30, %v17, 0
    %v41 = vsel %vm30, %v18, 0
    %v44 = vsel %vm30, %v19, 0
    %v47 = vsel %vm30, %v20, 0
    %v50 = vsel %vm30, %v21, 0
    %v53 = vsel %vm30, %v22, 0
    %55 = vmatprep.subr.mxu0 0.0
    %56 = vmatpush1.xpose.msra.mxu0 %v44
    %57 = vmatprep.subr.mxu0 0.0
    %58 = vmatpush1.xpose.msra.mxu0 %v47
    %59 = vmatprep.subr.mxu0 0.0
    %60 = vmatpush1.xpose.msra.mxu0 %v50
    %61 = vmatprep.subr.mxu0 0.0
    %62 = vmatpush1.xpose.msra.mxu0 %v53
    %63 = vmatprep.subr.mxu0 0.0
    %64 = vmatpush1.xpose.msra.mxu0 0.0
    %65 = vmatprep.subr.mxu0 0.0
    %66 = vmatpush1.xpose.msra.mxu0 0.0
    %67 = vmatprep.subr.mxu0 0.0
    %68 = vmatpush1.xpose.msra.mxu0 0.0
    %69 = vmatprep.subr.mxu0 0.0
    %70 = vmatpush1.xpose.msra.mxu0 0.0
    %71 = vmatprep.subr.mxu0 0.0
    %72 = vmatpush1.xpose.msra.mxu0 0.0
    %73 = vmatprep.subr.mxu0 0.0
    %74 = vmatpush1.xpose.msra.mxu0 0.0
    %75 = vmatprep.subr.mxu0 0.0
    %76 = vmatpush1.xpose.msra.mxu0 0.0
    %77 = vmatprep.subr.mxu0 0.0
    %78 = vmatpush1.xpose.msra.mxu0 0.0
    %79 = vmatprep.subr.mxu0 0.0
    %80 = vmatpush1.xpose.msra.mxu0 0.0
    %81 = vmatprep.subr.mxu0 0.0
    %82 = vmatpush1.xpose.msra.mxu0 0.0
    %83 = vmatprep.subr.mxu0 0.0
    %84 = vmatpush1.xpose.msra.mxu0 0.0
    %85 = vmatprep.subr.mxu0 0.0
    %86 = vmatpush1.xpose.msra.mxu0 0.0
    %87 = vmatprep.subr.mxu0 0.0
    %88 = vmatpush1.xpose.msra.mxu0 0.0
    %89 = vmatprep.subr.mxu0 0.0
    %90 = vmatpush1.xpose.msra.mxu0 0.0
    %91 = vmatprep.subr.mxu0 0.0
    %92 = vmatpush1.xpose.msra.mxu0 0.0
    %93 = vmatprep.subr.mxu0 0.0
    %94 = vmatpush1.xpose.msra.mxu0 0.0
    %95 = vmatprep.subr.mxu0 0.0
    %96 = vmatpush1.xpose.msra.mxu0 0.0
    %97 = vmatprep.subr.mxu0 0.0
    %98 = vmatpush1.xpose.msra.mxu0 0.0
    %99 = vmatprep.subr.mxu0 0.0
    %100 = vmatpush1.xpose.msra.mxu0 0.0
    %101 = vmatprep.subr.mxu0 0.0
    %102 = vmatpush1.xpose.msra.mxu0 0.0
    %103 = vmatprep.subr.mxu0 0.0
    %104 = vmatpush1.xpose.msra.mxu0 0.0
    %105 = vmatprep.subr.mxu0 0.0
    %106 = vmatpush1.xpose.msra.mxu0 0.0
    %107 = vmatprep.subr.mxu0 0.0
    %108 = vmatpush1.xpose.msra.mxu0 0.0
    %109 = vmatprep.subr.mxu0 0.0
    %110 = vmatpush1.xpose.msra.mxu0 0.0
    %111 = vmatprep.subr.mxu0 0.0
    %112 = vmatpush1.xpose.msra.mxu0 0.0
    %113 = vmatprep.subr.mxu0 0.0
    %114 = vmatpush1.xpose.msra.mxu0 0.0
    %115 = vmatprep.subr.mxu0 0.0
    %116 = vmatpush1.xpose.msra.mxu0 0.0
    %117 = vmatprep.subr.mxu0 0.0
    %118 = vmatpush1.xpose.msra.mxu0 0.0
    %119 = vmatprep.mubr.f32.mxu0 0.0
    %120 = vmatmul.mubr.f32.gmra.mrb[0].mxu0 %v32
    %v121 = vpop.f32.mrb[0].mxu0
    %v122 = vadd.f32 %v28, %v121
    %v123 = vpop.f32.mrb[0].mxu0
    %124 = vmatprep.mubr.f32.mxu0 0.0
    %125 = vmatmul.mubr.f32.gmra.mrb[0].mxu0 %v35
    %v126 = vpop.f32.mrb[0].mxu0
    %v127 = vadd.f32 %v28, %v126
    %v128 = vpop.f32.mrb[0].mxu0
    %129 = vmatprep.mubr.f32.mxu0 0.0
    %130 = vmatmul.mubr.f32.gmra.mrb[0].mxu0 %v38
    %v131 = vpop.f32.mrb[0].mxu0
    %v132 = vadd.f32 %v28, %v131
    %v133 = vpop.f32.mrb[0].mxu0
    %134 = vmatprep.mubr.f32.mxu0 0.0
    %135 = vmatmul.mubr.f32.gmra.mrb[0].mxu0 %v41
    %v136 = vpop.f32.mrb[0].mxu0
    %v137 = vadd.f32 %v28, %v136
    %v138 = vpop.f32.mrb[0].mxu0
    %139 = vdwg.mxu0
    %vm140 = vcmask 261120
    %141 = vst.msk [vmem:[#allocation2] sm:$0xff] %vm140, %v122
    %142 = vst.msk [vmem:[#allocation2 + $0x8] sm:$0xff] %vm140, %v127
    %143 = vst.msk [vmem:[#allocation2 + $0x10] sm:$0xff] %vm140, %v132
    %144 = vst.msk [vmem:[#allocation2 + $0x18] sm:$0xff] %vm140, %v137
    // Predicated region
    $region14: #{tpu_custom_call.1} parent=1 // pred_check
      _
    $region15: #{tpu_custom_call.1} parent=1 // pred_check_branch
      %146 = sbr.rel (0) target = $region17
    $region16: #{tpu_custom_call.1} parent=1 // pred_region
      %s148 = ssub.s32 512, 512
      %149 = vsyncadd [#allocation3], %s148
      %s150 = sshll.u32 [#allocation2], 4
      %s151 = int_to_ptr.vmem [resolvable:$true] %s150
      %156 = dma.vmem_to_hbm [thread:$0]  %s151, 512, %s3, [#allocation3], 128, 128, 8
    $region17: #{tpu_custom_call.1} parent=1 // pred_fallthru
      _
    // Predicated region
    $region18: #{tpu_custom_call.1} parent=1 // pred_check
      _
    $region19: #{tpu_custom_call.1} parent=1 // pred_check_branch
      %158 = sbr.rel (0) target = $region21
    $region20: #{tpu_custom_call.1} parent=1 // pred_region
      %159 = dma.done [#allocation3], 512
    $region21: #{tpu_custom_call.1} parent=1 // pred_fallthru
      _
    %160 = vsyncpa [#allocation3], 1

</llo_original>
